<compile_context>
chip_gen: v5e
topology: v5e:2x2
jax: 0.10.0
libtpu: 0.0.40
codegen_flags: <defaults>
</compile_context>

<pallas_src>
import jax
import jax.numpy as jnp
import numpy as np
from jax import lax
from jax.experimental import pallas as pl
from jax.experimental.pallas import tpu as pltpu


MAX_TILE_N = 2048  # max indices processed per grid step (16 full lane-registers)


def mode_fwd_kernel(table_ref, cols_ref, out_ref):
    """out[j] = table[cols[j]] for one lane-dense tile of indices.

    table_ref: (R, 1)      float32 -- resident table (sublane-major).
    cols_ref:  (1, TILE_N) int32   -- gather indices along the lane axis.
    out_ref:   (1, TILE_N) float32
    """
    table = table_ref[...]                    # (R, 1)
    cols = cols_ref[...]                      # (1, TN)
    r = table.shape[0]
    tn = cols.shape[1]

    # One-hot row select over the (small) table length R, then a sublane reduction.
    # Pure VPU/XLU work; padded slots carry cols == -1 so they never match any row.
    row_iota = lax.broadcasted_iota(jnp.int32, (r, tn), 0)        # (R, TN)
    mask = row_iota == cols                                        # (1,TN) -> (R,TN) bcast
    table_b = jnp.broadcast_to(table, (r, tn))                     # (R,1) -> (R,TN) lane bcast
    vals = jnp.where(mask, table_b, jnp.zeros((), table.dtype))    # (R, TN)
    out_ref[...] = jnp.sum(vals, axis=0, keepdims=True).astype(out_ref.dtype)


def mode_init(train_table):
    """PyTorch Mode.__init__: build the one-hot 'mode' table once (module state)."""
    row_sums = jnp.sum(train_table.astype(jnp.float32), axis=1)   # (R,)
    mode_ind = jnp.argmax(row_sums)
    table = jnp.zeros((train_table.shape[0],), jnp.float32).at[mode_ind].set(1.0)
    return table


def _pick_tile(n):
    """Lane-dense tile: multiple of 128, capped at MAX_TILE_N."""
    n128 = pl.cdiv(n, 128) * 128
    return min(n128, MAX_TILE_N)


def mode_forward(indices, table):
    """forward(indices): table[indices[:, 1]] -> (N,) float32."""
    n = indices.shape[0]
    r = table.shape[0]

    tile_n = _pick_tile(n)
    n_pad = pl.cdiv(n, tile_n) * tile_n
    # Lane-dense index slab; pad with -1 so padded slots never match any table row.
    cols = jnp.full((1, n_pad), -1, dtype=jnp.int32).at[0, :n].set(
        indices[:, 1].astype(jnp.int32))
    table_2d = table.reshape(r, 1)

    out = pl.pallas_call(
        mode_fwd_kernel,
        out_shape=jax.ShapeDtypeStruct((1, n_pad), table.dtype),
        grid_spec=pltpu.PrefetchScalarGridSpec(
            num_scalar_prefetch=0,
            grid=(n_pad // tile_n,),
            in_specs=[
                pl.BlockSpec((r, 1), lambda i: (0, 0)),          # table resident in VMEM
                pl.BlockSpec((1, tile_n), lambda i: (0, i)),     # index tile
            ],
            out_specs=pl.BlockSpec((1, tile_n), lambda i: (0, i)),
        ),
        compiler_params=pltpu.CompilerParams(
            dimension_semantics=("parallel",)),
    )(table_2d, cols)
    return out[0, :n]


if __name__ == "__main__":
    key = jax.random.PRNGKey(0)
    k_tbl, k_row, k_col = jax.random.split(key, 3)

    # Small deterministic shapes: original table (R=32, C=128), N=8 index pairs.
    R, C, N = 32, 128, 8
    train_table = jax.random.normal(k_tbl, (R, C), dtype=jnp.float32)
    rows = jax.random.randint(k_row, (N, 1), 0, R, dtype=jnp.int32)   # unused by forward
    cols = jax.random.randint(k_col, (N, 1), 0, R, dtype=jnp.int32)   # indexes length-R table
    indices = jnp.concatenate([rows, cols], axis=1)                   # (N, 2)

    table = mode_init(train_table)              # __init__ (hoisted module state)
    out = jax.block_until_ready(mode_forward(indices, table))

    # Pure-JAX reference of the PyTorch semantics.
    row_sums = jnp.sum(train_table, axis=1)
    mode_ind = jnp.argmax(row_sums)
    ref_table = jnp.zeros((R,), jnp.float32).at[mode_ind].set(1.0)
    ref = ref_table[indices[:, 1]]
    np.testing.assert_allclose(np.asarray(out), np.asarray(ref), rtol=1e-6, atol=1e-6)

    print("KERNEL_OK")
</pallas_src>

<mosaic_0001>
module attributes {stable_mosaic.version = 11 : i64} {
  func.func @mode_fwd_kernel(%arg0: i32, %arg1: memref<32x1xf32, #tpu.memory_space<vmem>>, %arg2: memref<1x128xi32, #tpu.memory_space<vmem>>, %arg3: memref<1x128xf32, #tpu.memory_space<vmem>>) attributes {dimension_semantics = [#tpu.dimension_semantics<parallel>], iteration_bounds = array<i64: 1>, scalar_prefetch = 0 : i64, scratch_operands = 0 : i64, tpu.core_type = #tpu.core_type<tc>, window_params = [{pipeline_mode = #tpu.pipeline_mode<synchronous>, transform_indices = @transform_0, window_bounds = array<i64: 32, 1>}, {transform_indices = @transform_1, window_bounds = array<i64: 1, 128>}, {transform_indices = @transform_2, window_bounds = array<i64: 1, 128>}]} {
    %c0 = arith.constant 0 : index
    %c0_0 = arith.constant 0 : index
    %0 = vector.load %arg1[%c0, %c0_0] : memref<32x1xf32, #tpu.memory_space<vmem>>, vector<32x1xf32>
    %c0_1 = arith.constant 0 : index
    %c0_2 = arith.constant 0 : index
    %1 = vector.load %arg2[%c0_1, %c0_2] : memref<1x128xi32, #tpu.memory_space<vmem>>, vector<1x128xi32>
    %2 = tpu.iota {dimensions = array<i32: 0>} : vector<32x128xi32>
    %3 = vector.broadcast %1 : vector<1x128xi32> to vector<32x128xi32>
    %4 = arith.cmpi eq, %2, %3 : vector<32x128xi32>
    %5 = vector.shape_cast %0 : vector<32x1xf32> to vector<32x1xf32>
    %6 = vector.broadcast %5 : vector<32x1xf32> to vector<32x128xf32>
    %cst = arith.constant 0.000000e+00 : f32
    %7 = vector.broadcast %cst : f32 to vector<32x128xf32>
    %8 = arith.select %4, %6, %7 : vector<32x128xi1>, vector<32x128xf32>
    %cst_3 = arith.constant dense<0.000000e+00> : vector<128xf32>
    %9 = vector.multi_reduction <add>, %8, %cst_3 [0] : vector<32x128xf32> to vector<128xf32>
    %10 = vector.shape_cast %9 : vector<128xf32> to vector<1x128xf32>
    %c0_4 = arith.constant 0 : index
    %c0_5 = arith.constant 0 : index
    %11 = vector.load %arg3[%c0_4, %c0_5] : memref<1x128xf32, #tpu.memory_space<vmem>>, vector<1x128xf32>
    tpu.vector_store %arg3[%c0_4, %c0_5], %10 {strides = array<i32>} : memref<1x128xf32, #tpu.memory_space<vmem>>, vector<1x128xf32>,
    return
  }
  func.func @transform_0(%arg0: i32) -> (i32, i32) {
    %c0_i32 = arith.constant 0 : i32
    %c0_i32_0 = arith.constant 0 : i32
    %c0_i32_1 = arith.constant 0 : i32
    return %c0_i32, %c0_i32_0 : i32, i32
  }
  func.func @transform_1(%arg0: i32) -> (i32, i32) {
    %c0_i32 = arith.constant 0 : i32
    %c0_i32_0 = arith.constant 0 : i32
    return %c0_i32, %arg0 : i32, i32
  }
  func.func @transform_2(%arg0: i32) -> (i32, i32) {
    %c0_i32 = arith.constant 0 : i32
    %c0_i32_0 = arith.constant 0 : i32
    return %c0_i32, %arg0 : i32, i32
  }
}

</mosaic_0001>

<llo_original>
// kernel: tpu_custom_call.1
$region0: #{tpu_custom_call.1}
  #allocation0 [shape = 'u32[]', space=smem, size = 0x4, offset = 0x4, fixed_abs, tag = 'smem constant byte address 0x4 - core index']
  #allocation1 [shape = 'u32[72,128]{1,0:T(1,128)}', space=vmem, size = 0x9000, scoped, tag = 'internal scratch']
  %s0 = inlined_call_operand.vmem [shape: f32[32,1], index: 0, kind: input, shape index: {}]
  %s1 = inlined_call_operand.vmem [shape: s32[1,128], index: 1, kind: input, shape index: {}]
  %s2 = inlined_call_operand.hbm [shape: f32[1,128], index: 2, kind: output, shape index: {}]
  %s3 = sld [smem:[#allocation0]]
  $region18: #{tpu_custom_call.1} parent=0
    _
  %s5 = ssub.s32 1, %s3
  %s6 = scalar_select 0, %s5, %s3
  $region1: #{tpu_custom_call.1} parent=0
    #allocation2 [shape = 'u8[512]{0}', space=vmem, size = 0x400, scoped, tag = 'output window, operand 0, single buffered']
    #allocation3 [shape = 's32[1]{0}', space=sflag, size = 0x4, scoped, tag = 'scoped memory for tpu_custom_call.1']
    %7 = vsyncpa [#allocation3], 0
    // Predicated region
    $region2: #{tpu_custom_call.1} parent=1 // pred_check
      _
    $region3: #{tpu_custom_call.1} parent=1 // pred_check_branch
      %9 = sbr.rel (0) target = $region5
    $region4: #{tpu_custom_call.1} parent=1 // pred_region
      _
    $region5: #{tpu_custom_call.1} parent=1 // pred_fallthru
      _
    // Predicated region
    $region6: #{tpu_custom_call.1} parent=1 // pred_check
      _
    $region7: #{tpu_custom_call.1} parent=1 // pred_check_branch
      %11 = sbr.rel (0) target = $region9
    $region8: #{tpu_custom_call.1} parent=1 // pred_region
      _
    $region9: #{tpu_custom_call.1} parent=1 // pred_fallthru
      _
    %v12 = vld [vmem:[%s0] sm:$0xff]
    %v13 = vld [vmem:[%s0 + $0x8] sm:$0xff]
    %v14 = vld [vmem:[%s0 + $0x10] sm:$0xff]
    %v15 = vld [vmem:[%s0 + $0x18] sm:$0xff]
    %v16 = vld [vmem:[%s1] sm:$0x1]
    %v17 = vlaneseq
    %v18 = vshrl.u32 %v17, 7
    %v19 = vadd.s32 %v18, 8
    %v20 = vadd.s32 %v18, 16
    %v21 = vadd.s32 %v18, 24
    %v22 = vperm.slane %v16, 0
    %vm23 = vcmp.eq.s32.totalorder %v18, %v22
    %vm24 = vcmp.eq.s32.totalorder %v19, %v22
    %vm25 = vcmp.eq.s32.totalorder %v20, %v22
    %vm26 = vcmp.eq.s32.totalorder %v21, %v22
    %28 = vset.pattern.permute.xlu0 0
    %29 = vperm.xlu0 %28, %v12
    %v30 = vpop.permute.xlu0 %29
    %33 = vset.pattern.permute.xlu0 0
    %34 = vperm.xlu0 %33, %v13
    %v35 = vpop.permute.xlu0 %34
    %38 = vset.pattern.permute.xlu0 0
    %39 = vperm.xlu0 %38, %v14
    %v40 = vpop.permute.xlu0 %39
    %43 = vset.pattern.permute.xlu0 0
    %44 = vperm.xlu0 %43, %v15
    %v45 = vpop.permute.xlu0 %44
    %v47 = vsel %vm23, %v30, 0.0
    %v48 = vsel %vm24, %v35, 0.0
    %v49 = vsel %vm25, %v40, 0.0
    %v50 = vsel %vm26, %v45, 0.0
    %v51 = vadd.f32 %v47, %v48
    %v52 = vadd.f32 %v51, %v49
    %v53 = vadd.f32 %v52, %v50
    %v54 = vrot.slane %v53, 4
    %v55 = vadd.f32 %v53, %v54
    %v56 = vrot.slane %v55, 2
    %v57 = vadd.f32 %v55, %v56
    %v58 = vrot.slane %v57, 1
    %v59 = vadd.f32 %v57, %v58
    %60 = vst [vmem:[#allocation2] sm:$0x1] %v59
    // Predicated region
    $region10: #{tpu_custom_call.1} parent=1 // pred_check
      _
    $region11: #{tpu_custom_call.1} parent=1 // pred_check_branch
      %62 = sbr.rel (0) target = $region13
    $region12: #{tpu_custom_call.1} parent=1 // pred_region
      %64 = vsyncadd [#allocation3], 0
      %s66 = sshll.u32 [#allocation2], 4
      %s67 = int_to_ptr.vmem [resolvable:$true] %s66
      %s68 = sshll.u32 %s2, 4
      %s69 = int_to_ptr.hbm [resolvable:$true] %s68
      %71 = dma.vmem_to_hbm [thread:$0]  %s67, 16, %s69, [#allocation3]
    $region13: #{tpu_custom_call.1} parent=1 // pred_fallthru
      _
    // Predicated region
    $region14: #{tpu_custom_call.1} parent=1 // pred_check
      _
    $region15: #{tpu_custom_call.1} parent=1 // pred_check_branch
      %73 = sbr.rel (0) target = $region17
    $region16: #{tpu_custom_call.1} parent=1 // pred_region
      %75 = dma.done [#allocation3], 16
    $region17: #{tpu_custom_call.1} parent=1 // pred_fallthru
      _
    %76 = vsyncpa [#allocation3], 1

</llo_original>
